<compile_context>
chip_gen: v7x
topology: tpu7x:2x2x1
jax: 0.10.0
libtpu: 0.0.40
codegen_flags: <defaults>
</compile_context>

<pallas_src>
import functools

import jax
import jax.numpy as jnp
from jax import lax
from jax.experimental import pallas as pl
from jax.experimental.pallas import tpu as pltpu

_LANE = 128
_MAX_TI = 1024     # row (lane) tile
_MAX_TJ = 2048     # column (reduction) tile
_SUB_CHUNK = 256   # sublane chunk for the dense in-kernel reduction

_TILE_SKIP = 0     # no column of the tile is in any row's risk set
_TILE_FULL = 1     # every column of the tile is in every row's risk set
_TILE_DENSE = 2    # mixed -> per-element compare/select


def _round_up(x, m):
    return ((x + m - 1) // m) * m


def _cox_kernel(cls_ref, esum_ref, m_ref, row_ref, col_ref, out_ref, acc_ref,
                *, chunk):
    """One (i, j) grid step.

    cls_ref : (NI*NJ,) SMEM int32  tile class (SKIP / FULL / DENSE)
    esum_ref: (NJ,)    SMEM f32    sum of exp(rs_j - m) per column tile
    m_ref   : (1,)     SMEM f32    m = max(rs) (log-sum-exp stabilizer)
    row_ref : (3, TI)  VMEM        rows: 0 = rs_i, 1 = t_i, 2 = observed_i
    col_ref : (TJ, 2)  VMEM        cols: 0 = exp(rs_j - m) (pad -> 0), 1 = t_j
    out_ref : (1, TI)  VMEM        per-sample partial likelihood (0 if unobs/pad)
    acc_ref : (1, TI)  VMEM scratch: sum_j exp(rs_j - m) * [t_j >= t_i]
    """
    i = pl.program_id(0)
    j = pl.program_id(1)
    nj = pl.num_programs(1)

    @pl.when(j == 0)
    def _init():
        acc_ref[...] = jnp.zeros_like(acc_ref)

    cls = cls_ref[i * nj + j]

    @pl.when(cls == _TILE_FULL)
    def _full():
        # Whole column tile lies inside every row's risk set: one broadcast add.
        acc_ref[...] += esum_ref[j]

    @pl.when(cls == _TILE_DENSE)
    def _dense():
        t_i = row_ref[1:2, :]                                  # (1, TI)
        n_chunks = col_ref.shape[0] // chunk

        def body(c, acc):
            off = c * chunk
            e_j = col_ref[pl.ds(off, chunk), 0:1]              # (chunk, 1)
            t_j = col_ref[pl.ds(off, chunk), 1:2]              # (chunk, 1)
            # Fused select + sublane reduce: lane-dense (1, TI) partials,
            # bounded (chunk, TI) live intermediate.
            contrib = jnp.where(t_j >= t_i, e_j, jnp.float32(0.0))
            return acc + jnp.sum(contrib, axis=0, keepdims=True)

        acc_ref[...] = lax.fori_loop(0, n_chunks, body, acc_ref[...],
                                     unroll=True)

    @pl.when(j == nj - 1)
    def _finalize():
        m = m_ref[0]
        rs_i = row_ref[0:1, :]                                 # (1, TI)
        obs_i = row_ref[2:3, :]                                # (1, TI)
        log_risk = m + jnp.log(acc_ref[...])   # stabilized log(sum exp(rs_j))
        hazard = jnp.exp(rs_i)                 # PyTorch quirk: exp(rs), not rs
        out_ref[...] = jnp.where(obs_i > 0.0, hazard - log_risk,
                                 jnp.float32(0.0))


def cox_time_dependent_loss(risk_scores, y_true):
    """Pallas implementation of CoxTimeDependentLoss.forward."""
    rs = jnp.reshape(risk_scores, (-1,)).astype(jnp.float32)
    n = rs.shape[0]
    times = y_true[:, 0].astype(jnp.float32)
    observed = (y_true[:, 1] != 0).astype(jnp.float32)

    # ---- static tile sizing ------------------------------------------------
    # Row tile: <= _MAX_TI, and <= ~n/2 (lane-rounded) so the "parallel" row
    # axis has at least two tiles for the v7x megacore.
    half = -(-n // 2)
    ti = max(_LANE, min(_MAX_TI, _round_up(half, _LANE)))
    p = _round_up(n, ti)
    ni = p // ti
    # Column tile: largest multiple of TI that divides P, capped at _MAX_TJ
    # (keeps the narrow (TJ, 2) block's lane-padding waste to ~1 MiB).
    k = max(1, min(_MAX_TJ // ti, ni))
    while ni % k != 0:
        k -= 1
    tj = k * ti
    nj = p // tj
    chunk = _SUB_CHUNK if tj % _SUB_CHUNK == 0 else _LANE
    pad = p - n

    # ---- sort by time (descending): every risk set becomes a prefix --------
    order = jnp.argsort(-times)
    rs_s = jnp.take(rs, order)
    t_s = jnp.take(times, order)
    obs_s = jnp.take(observed, order)

    m = jnp.max(rs).astype(jnp.float32)            # max over real samples
    exp_s = jnp.exp(rs_s - m)                      # hoisted out of the kernel

    rs_p = jnp.pad(rs_s, (0, pad))                 # value gated by observed=0
    t_p = jnp.pad(t_s, (0, pad), constant_values=-jnp.inf)
    obs_p = jnp.pad(obs_s, (0, pad))
    exp_p = jnp.pad(exp_s, (0, pad))               # pad -> 0: contributes nothing

    row_data = jnp.stack([rs_p, t_p, obs_p], axis=0)            # (3, P)
    col_data = jnp.stack([exp_p, t_p], axis=1)                  # (P, 2)

    # ---- per-tile stats -> SKIP / FULL / DENSE classes (SMEM) ---------------
    row_t = t_p.reshape(ni, ti)
    col_t = t_p.reshape(nj, tj)
    row_tmax = row_t.max(axis=1)                                # (NI,)
    row_tmin = row_t.min(axis=1)
    col_tmax = col_t.max(axis=1)                                # (NJ,)
    col_tmin = col_t.min(axis=1)
    col_esum = exp_p.reshape(nj, tj).sum(axis=1)                # (NJ,)

    full = col_tmin[None, :] >= row_tmax[:, None]               # all pairs in
    skip = col_tmax[None, :] < row_tmin[:, None]                # no pair in
    tile_class = jnp.where(full, _TILE_FULL,
                           jnp.where(skip, _TILE_SKIP, _TILE_DENSE))
    tile_class = tile_class.astype(jnp.int32).reshape(-1)       # (NI*NJ,)
    m_arr = jnp.reshape(m, (1,))

    kernel = functools.partial(_cox_kernel, chunk=chunk)
    partial_ll = pl.pallas_call(
        kernel,
        out_shape=jax.ShapeDtypeStruct((1, p), jnp.float32),
        grid=(ni, nj),                      # (row tiles, reduction tiles)
        in_specs=[
            pl.BlockSpec(memory_space=pltpu.MemorySpace.SMEM),  # tile classes
            pl.BlockSpec(memory_space=pltpu.MemorySpace.SMEM),  # per-tile exp sums
            pl.BlockSpec(memory_space=pltpu.MemorySpace.SMEM),  # m = max(rs)
            pl.BlockSpec((3, ti), lambda i, j: (0, i)),         # row data
            pl.BlockSpec((tj, 2), lambda i, j: (j, 0)),         # col data
        ],
        out_specs=pl.BlockSpec((1, ti), lambda i, j: (0, i)),
        scratch_shapes=[pltpu.VMEM((1, ti), jnp.float32)],
        compiler_params=pltpu.CompilerParams(
            dimension_semantics=("parallel", "arbitrary")),
    )(tile_class, col_esum, m_arr, row_data, col_data)

    return -jnp.sum(partial_ll)


def cox_time_dependent_loss_ref(risk_scores, y_true):
    """Pure-JAX reference mirroring the PyTorch code."""
    rs = jnp.reshape(risk_scores, (-1,)).astype(jnp.float32)
    times = y_true[:, 0].astype(jnp.float32)
    observed = y_true[:, 1] != 0
    exp_rs = jnp.exp(rs)
    mask = times[None, :] >= times[:, None]              # [i, j] = t_j >= t_i
    risk_sums = jnp.sum(mask * exp_rs[None, :], axis=1)
    partial = jnp.where(observed, exp_rs - jnp.log(risk_sums), 0.0)
    return -jnp.sum(partial)


if __name__ == "__main__":
    key = jax.random.PRNGKey(0)
    k1, k2, k3 = jax.random.split(key, 3)

    # Small primary case (single-tile, dense path).
    N = 8
    risk_scores = jax.random.normal(k1, (N,), jnp.float32)
    times = jax.random.uniform(k2, (N,), jnp.float32, minval=0.1, maxval=10.0)
    events = (jax.random.uniform(k3, (N,)) > 0.4).astype(jnp.float32)
    events = events.at[0].set(1.0)   # guarantee at least one observed event
    y_true = jnp.stack([times, events], axis=1)  # (N, 2): [:,0]=time, [:,1]=event

    loss = cox_time_dependent_loss(risk_scores, y_true)
    jax.block_until_ready(loss)
    ref = cox_time_dependent_loss_ref(risk_scores, y_true)
    assert jnp.allclose(loss, ref, rtol=1e-4, atol=1e-4), (loss, ref)

    # Case exercising padding + two row tiles (megacore split) + chunked loop.
    k4, k5, k6 = jax.random.split(jax.random.PRNGKey(0), 3)
    N2 = 600
    rs2 = jax.random.normal(k4, (N2,), jnp.float32)
    t2 = jax.random.uniform(k5, (N2,), jnp.float32, minval=0.1, maxval=10.0)
    ev2 = (jax.random.uniform(k6, (N2,)) > 0.5).astype(jnp.float32)
    ev2 = ev2.at[0].set(1.0)
    y2 = jnp.stack([t2, ev2], axis=1)

    loss2 = cox_time_dependent_loss(rs2, y2)
    jax.block_until_ready(loss2)
    ref2 = cox_time_dependent_loss_ref(rs2, y2)
    assert jnp.allclose(loss2, ref2, rtol=1e-4, atol=1e-3), (loss2, ref2)

    # Larger case exercising the sorted banded structure: SKIP, FULL and
    # DENSE tile classes all occur on the (3, 3) grid.
    k7, k8, k9 = jax.random.split(jax.random.PRNGKey(1), 3)
    N3 = 3000
    rs3 = jax.random.normal(k7, (N3,), jnp.float32)
    t3 = jax.random.uniform(k8, (N3,), jnp.float32, minval=0.1, maxval=10.0)
    ev3 = (jax.random.uniform(k9, (N3,)) > 0.5).astype(jnp.float32)
    ev3 = ev3.at[0].set(1.0)
    y3 = jnp.stack([t3, ev3], axis=1)

    loss3 = cox_time_dependent_loss(rs3, y3)
    jax.block_until_ready(loss3)
    ref3 = cox_time_dependent_loss_ref(rs3, y3)
    assert jnp.allclose(loss3, ref3, rtol=1e-4, atol=1e-2), (loss3, ref3)

    print("KERNEL_OK")
</pallas_src>

<mosaic_0001>
module attributes {stable_mosaic.version = 11 : i64} {
  func.func @_cox_kernel(%arg0: i32, %arg1: i32, %arg2: memref<1xi32, #tpu.memory_space<smem>>, %arg3: memref<1xf32, #tpu.memory_space<smem>>, %arg4: memref<1xf32, #tpu.memory_space<smem>>, %arg5: memref<3x128xf32, #tpu.memory_space<vmem>>, %arg6: memref<128x2xf32, #tpu.memory_space<vmem>>, %arg7: memref<1x128xf32, #tpu.memory_space<vmem>>, %arg8: memref<1x128xf32, #tpu.memory_space<vmem>>) attributes {dimension_semantics = [#tpu.dimension_semantics<parallel>, #tpu.dimension_semantics<arbitrary>], iteration_bounds = array<i64: 1, 1>, scalar_prefetch = 0 : i64, scratch_operands = 1 : i64, tpu.core_type = #tpu.core_type<tc>, window_params = [{transform_indices = @transform_0, window_bounds = array<i64: 1>}, {transform_indices = @transform_1, window_bounds = array<i64: 1>}, {transform_indices = @transform_2, window_bounds = array<i64: 1>}, {transform_indices = @transform_3, window_bounds = array<i64: 3, 128>}, {transform_indices = @transform_4, window_bounds = array<i64: 128, 2>}, {transform_indices = @transform_5, window_bounds = array<i64: 1, 128>}]} {
    %c0_i32 = arith.constant 0 : i32
    %0 = arith.cmpi eq, %arg1, %c0_i32 : i32
    %1 = arith.extui %0 : i1 to i32
    %c0_i32_0 = arith.constant 0 : i32
    %2 = arith.cmpi ne, %1, %c0_i32_0 : i32
    scf.if %2 {
      %cst = arith.constant 0.000000e+00 : f32
      %16 = vector.broadcast %cst : f32 to vector<1x128xf32>
      %c0 = arith.constant 0 : index
      %c0_6 = arith.constant 0 : index
      %17 = vector.load %arg8[%c0, %c0_6] : memref<1x128xf32, #tpu.memory_space<vmem>>, vector<1x128xf32>
      tpu.vector_store %arg8[%c0, %c0_6], %16 {strides = array<i32>} : memref<1x128xf32, #tpu.memory_space<vmem>>, vector<1x128xf32>,
    } else {
    }
    %c1_i32 = arith.constant 1 : i32
    %3 = arith.muli %arg0, %c1_i32 : i32
    %4 = arith.addi %3, %arg1 : i32
    %5 = arith.index_cast %4 : i32 to index
    %6 = memref.load %arg2[%5] : memref<1xi32, #tpu.memory_space<smem>>
    %c1_i32_1 = arith.constant 1 : i32
    %7 = arith.cmpi eq, %6, %c1_i32_1 : i32
    %8 = arith.extui %7 : i1 to i32
    %c0_i32_2 = arith.constant 0 : i32
    %9 = arith.cmpi ne, %8, %c0_i32_2 : i32
    scf.if %9 {
      %c0 = arith.constant 0 : index
      %c0_6 = arith.constant 0 : index
      %16 = vector.load %arg8[%c0, %c0_6] : memref<1x128xf32, #tpu.memory_space<vmem>>, vector<1x128xf32>
      %17 = arith.index_cast %arg1 : i32 to index
      %18 = memref.load %arg3[%17] : memref<1xf32, #tpu.memory_space<smem>>
      %19 = vector.broadcast %18 : f32 to vector<1x128xf32>
      %20 = arith.addf %16, %19 : vector<1x128xf32>
      %c0_7 = arith.constant 0 : index
      %c0_8 = arith.constant 0 : index
      %21 = vector.load %arg8[%c0_7, %c0_8] : memref<1x128xf32, #tpu.memory_space<vmem>>, vector<1x128xf32>
      tpu.vector_store %arg8[%c0_7, %c0_8], %20 {strides = array<i32>} : memref<1x128xf32, #tpu.memory_space<vmem>>, vector<1x128xf32>,
    } else {
    }
    %c2_i32 = arith.constant 2 : i32
    %10 = arith.cmpi eq, %6, %c2_i32 : i32
    %11 = arith.extui %10 : i1 to i32
    %c0_i32_3 = arith.constant 0 : i32
    %12 = arith.cmpi ne, %11, %c0_i32_3 : i32
    scf.if %12 {
      %c1 = arith.constant 1 : index
      %c0 = arith.constant 0 : index
      %16 = vector.load %arg5[%c1, %c0] : memref<3x128xf32, #tpu.memory_space<vmem>>, vector<1x128xf32>
      %c0_6 = arith.constant 0 : index
      %c0_7 = arith.constant 0 : index
      %17 = vector.load %arg8[%c0_6, %c0_7] : memref<1x128xf32, #tpu.memory_space<vmem>>, vector<1x128xf32>
      %c0_i32_8 = arith.constant 0 : i32
      %c128_i32 = arith.constant 128 : i32
      %18 = arith.muli %c0_i32_8, %c128_i32 : i32
      %19 = arith.index_cast %18 : i32 to index
      %c0_9 = arith.constant 0 : index
      %20 = vector.load %arg6[%19, %c0_9] : memref<128x2xf32, #tpu.memory_space<vmem>>, vector<128x1xf32>
      %21 = arith.index_cast %18 : i32 to index
      %c1_10 = arith.constant 1 : index
      %22 = vector.load %arg6[%21, %c1_10] : memref<128x2xf32, #tpu.memory_space<vmem>>, vector<128x1xf32>
      %23 = vector.broadcast %22 : vector<128x1xf32> to vector<128x128xf32>
      %24 = vector.broadcast %16 : vector<1x128xf32> to vector<128x128xf32>
      %25 = arith.cmpf oge, %23, %24 : vector<128x128xf32>
      %cst = arith.constant 0.000000e+00 : f32
      %26 = vector.shape_cast %20 : vector<128x1xf32> to vector<128x1xf32>
      %27 = vector.broadcast %26 : vector<128x1xf32> to vector<128x128xf32>
      %28 = vector.broadcast %cst : f32 to vector<128x128xf32>
      %29 = arith.select %25, %27, %28 : vector<128x128xi1>, vector<128x128xf32>
      %cst_11 = arith.constant dense<0.000000e+00> : vector<128xf32>
      %30 = vector.multi_reduction <add>, %29, %cst_11 [0] : vector<128x128xf32> to vector<128xf32>
      %31 = vector.shape_cast %30 : vector<128xf32> to vector<1x128xf32>
      %32 = arith.addf %17, %31 : vector<1x128xf32>
      %c1_i32_12 = arith.constant 1 : i32
      %c0_13 = arith.constant 0 : index
      %c0_14 = arith.constant 0 : index
      %33 = vector.load %arg8[%c0_13, %c0_14] : memref<1x128xf32, #tpu.memory_space<vmem>>, vector<1x128xf32>
      tpu.vector_store %arg8[%c0_13, %c0_14], %32 {strides = array<i32>} : memref<1x128xf32, #tpu.memory_space<vmem>>, vector<1x128xf32>,
    } else {
    }
    %c0_i32_4 = arith.constant 0 : i32
    %13 = arith.cmpi eq, %arg1, %c0_i32_4 : i32
    %14 = arith.extui %13 : i1 to i32
    %c0_i32_5 = arith.constant 0 : i32
    %15 = arith.cmpi ne, %14, %c0_i32_5 : i32
    scf.if %15 {
      %c0 = arith.constant 0 : index
      %16 = memref.load %arg4[%c0] : memref<1xf32, #tpu.memory_space<smem>>
      %c0_6 = arith.constant 0 : index
      %c0_7 = arith.constant 0 : index
      %17 = vector.load %arg5[%c0_6, %c0_7] : memref<3x128xf32, #tpu.memory_space<vmem>>, vector<1x128xf32>
      %c2 = arith.constant 2 : index
      %c0_8 = arith.constant 0 : index
      %18 = vector.load %arg5[%c2, %c0_8] : memref<3x128xf32, #tpu.memory_space<vmem>>, vector<1x128xf32>
      %c0_9 = arith.constant 0 : index
      %c0_10 = arith.constant 0 : index
      %19 = vector.load %arg8[%c0_9, %c0_10] : memref<1x128xf32, #tpu.memory_space<vmem>>, vector<1x128xf32>
      %20 = math.log %19 : vector<1x128xf32>
      %21 = vector.broadcast %16 : f32 to vector<1x128xf32>
      %22 = arith.addf %21, %20 : vector<1x128xf32>
      %23 = math.exp %17 : vector<1x128xf32>
      %cst = arith.constant 0.000000e+00 : f32
      %24 = vector.broadcast %cst : f32 to vector<1x128xf32>
      %25 = arith.cmpf ogt, %18, %24 : vector<1x128xf32>
      %26 = arith.subf %23, %22 : vector<1x128xf32>
      %cst_11 = arith.constant 0.000000e+00 : f32
      %27 = vector.broadcast %cst_11 : f32 to vector<1x128xf32>
      %28 = arith.select %25, %26, %27 : vector<1x128xi1>, vector<1x128xf32>
      %c0_12 = arith.constant 0 : index
      %c0_13 = arith.constant 0 : index
      %29 = vector.load %arg7[%c0_12, %c0_13] : memref<1x128xf32, #tpu.memory_space<vmem>>, vector<1x128xf32>
      tpu.vector_store %arg7[%c0_12, %c0_13], %28 {strides = array<i32>} : memref<1x128xf32, #tpu.memory_space<vmem>>, vector<1x128xf32>,
    } else {
    }
    return
  }
  func.func @transform_0(%arg0: i32, %arg1: i32) -> i32 {
    %c0_i32 = arith.constant 0 : i32
    %c0_i32_0 = arith.constant 0 : i32
    return %c0_i32 : i32
  }
  func.func @transform_1(%arg0: i32, %arg1: i32) -> i32 {
    %c0_i32 = arith.constant 0 : i32
    %c0_i32_0 = arith.constant 0 : i32
    return %c0_i32 : i32
  }
  func.func @transform_2(%arg0: i32, %arg1: i32) -> i32 {
    %c0_i32 = arith.constant 0 : i32
    %c0_i32_0 = arith.constant 0 : i32
    return %c0_i32 : i32
  }
  func.func @transform_3(%arg0: i32, %arg1: i32) -> (i32, i32) {
    %c0_i32 = arith.constant 0 : i32
    %c0_i32_0 = arith.constant 0 : i32
    return %c0_i32, %arg0 : i32, i32
  }
  func.func @transform_4(%arg0: i32, %arg1: i32) -> (i32, i32) {
    %c0_i32 = arith.constant 0 : i32
    %c0_i32_0 = arith.constant 0 : i32
    return %arg1, %c0_i32 : i32, i32
  }
  func.func @transform_5(%arg0: i32, %arg1: i32) -> (i32, i32) {
    %c0_i32 = arith.constant 0 : i32
    %c0_i32_0 = arith.constant 0 : i32
    return %c0_i32, %arg0 : i32, i32
  }
}

</mosaic_0001>

<llo_original>
// kernel: tpu_custom_call.1
$region0: #{tpu_custom_call.1}
  #allocation0 [shape = 'u32[]', space=smem, size = 0x4, offset = 0x4, fixed_abs, tag = 'smem constant byte address 0x4 - core index']
  #allocation1 [shape = 'u32[144,128]{1,0:T(1,128)}', space=vmem, size = 0x12000, scoped, tag = 'internal scratch']
  #allocation2 [shape = 'f32[1,128]{1,0:T(1,128)}', space=vmem, size = 0x200, scoped, tag = 'scratch operand']
  #allocation3 [shape = 's32[1]{0:T(128)S(6)}', space=smem, size = 0x200, scoped, tag = 'scoped memory for tpu_custom_call.1']
  #allocation4 [shape = 'f32[1]{0:T(128)S(6)}', space=smem, size = 0x200, scoped, tag = 'scoped memory for tpu_custom_call.1']
  #allocation5 [shape = 'f32[1]{0:T(128)S(6)}', space=smem, size = 0x200, scoped, tag = 'scoped memory for tpu_custom_call.1']
  %s0 = inlined_call_operand.<no memory space> [shape: s32[1], index: 0, kind: input, shape index: {}]
  %s1 = inlined_call_operand.<no memory space> [shape: f32[1], index: 1, kind: input, shape index: {}]
  %s2 = inlined_call_operand.<no memory space> [shape: f32[1], index: 2, kind: input, shape index: {}]
  %s3 = inlined_call_operand.vmem [shape: f32[3,128], index: 3, kind: input, shape index: {}]
  %s4 = inlined_call_operand.vmem [shape: f32[128,2], index: 4, kind: input, shape index: {}]
  %s5 = inlined_call_operand.hbm [shape: f32[1,128], index: 5, kind: output, shape index: {}]
  %s6 = sld [smem:[#allocation0]]
  $region46: #{tpu_custom_call.1} parent=0
    _
  %s8 = ssub.s32 1, %s6
  %s9 = scalar_select 0, %s8, %s6
  %10 = sst [smem:[#allocation3]] %s0
  %11 = sst [smem:[#allocation4]] %s1
  %12 = sst [smem:[#allocation5]] %s2
  $region1: #{tpu_custom_call.1} parent=0
    #allocation6 [shape = 'u8[512]{0}', space=vmem, size = 0x400, scoped, tag = 'output window, operand 0, single buffered']
    #allocation7 [shape = 's32[1]{0}', space=sflag, size = 0x4, scoped, tag = 'scoped memory for tpu_custom_call.1']
    %13 = vsyncpa [#allocation7], 0
    // Predicated region
    $region2: #{tpu_custom_call.1} parent=1 // pred_check
      _
    $region3: #{tpu_custom_call.1} parent=1 // pred_check_branch
      %15 = sbr.rel (0) target = $region5
    $region4: #{tpu_custom_call.1} parent=1 // pred_region
      _
    $region5: #{tpu_custom_call.1} parent=1 // pred_fallthru
      _
    // Predicated region
    $region6: #{tpu_custom_call.1} parent=1 // pred_check
      _
    $region7: #{tpu_custom_call.1} parent=1 // pred_check_branch
      %17 = sbr.rel (0) target = $region9
    $region8: #{tpu_custom_call.1} parent=1 // pred_region
      _
    $region9: #{tpu_custom_call.1} parent=1 // pred_fallthru
      _
    // Predicated region
    $region10: #{tpu_custom_call.1} parent=1 // pred_check
      _
    $region11: #{tpu_custom_call.1} parent=1 // pred_check_branch
      %19 = sbr.rel (0) target = $region13
    $region12: #{tpu_custom_call.1} parent=1 // pred_region
      _
    $region13: #{tpu_custom_call.1} parent=1 // pred_fallthru
      _
    // Predicated region
    $region14: #{tpu_custom_call.1} parent=1 // pred_check
      _
    $region15: #{tpu_custom_call.1} parent=1 // pred_check_branch
      %21 = sbr.rel (0) target = $region17
    $region16: #{tpu_custom_call.1} parent=1 // pred_region
      _
    $region17: #{tpu_custom_call.1} parent=1 // pred_fallthru
      _
    // Predicated region
    $region18: #{tpu_custom_call.1} parent=1 // pred_check
      _
    $region19: #{tpu_custom_call.1} parent=1 // pred_check_branch
      %23 = sbr.rel (0) target = $region21
    $region20: #{tpu_custom_call.1} parent=1 // pred_region
      _
    $region21: #{tpu_custom_call.1} parent=1 // pred_fallthru
      _
    %p24 = scmp.eq.s32.totalorder 0, 0
    // Predicated region
    $region22: #{tpu_custom_call.1} parent=1 // pred_check
      %p25 = pneg %p24
    $region23: #{tpu_custom_call.1} parent=1 // pred_check_branch
      %27 = sbr.rel (%p25) target = $region25
    $region24: #{tpu_custom_call.1} parent=1 // pred_region
      %28 = vst [vmem:[#allocation2] sm:$0x1] 0.0
    $region25: #{tpu_custom_call.1} parent=1 // pred_fallthru
      _
    %s29 = sadd.s32 0, 0
    %s30 = sld [smem:[#allocation3 + %s29]]
    %p31 = scmp.eq.s32.totalorder %s30, 1
    // Predicated region
    $region26: #{tpu_custom_call.1} parent=1 // pred_check
      %p32 = pneg %p31
    $region27: #{tpu_custom_call.1} parent=1 // pred_check_branch
      %34 = sbr.rel (%p32) target = $region29
    $region28: #{tpu_custom_call.1} parent=1 // pred_region
      %v35 = vld [vmem:[#allocation2] sm:$0x1]
      %s36 = sld [smem:[#allocation4]]
      %v37 = vstv %s36
      %v38 = vadd.f32 %v35, %v37
      %39 = vst [vmem:[#allocation2] sm:$0x1] %v38
    $region29: #{tpu_custom_call.1} parent=1 // pred_fallthru
      _
    %p40 = scmp.eq.s32.totalorder %s30, 2
    // Predicated region
    $region30: #{tpu_custom_call.1} parent=1 // pred_check
      %p41 = pneg %p40
    $region31: #{tpu_custom_call.1} parent=1 // pred_check_branch
      %43 = sbr.rel (%p41) target = $region33
    $region32: #{tpu_custom_call.1} parent=1 // pred_region
      %v44 = vld [vmem:[%s3 + $0x1] sm:$0x1]
      %v45 = vld [vmem:[#allocation2] sm:$0x1]
      %v46 = vld [vmem:[%s4] sm:$0xff]
      %v47 = vld [vmem:[%s4 + $0x8] sm:$0xff]
      %v48 = vld [vmem:[%s4 + $0x10] sm:$0xff]
      %v49 = vld [vmem:[%s4 + $0x18] sm:$0xff]
      %v50 = vld [vmem:[%s4 + $0x20] sm:$0xff]
      %v51 = vld [vmem:[%s4 + $0x28] sm:$0xff]
      %v52 = vld [vmem:[%s4 + $0x30] sm:$0xff]
      %v53 = vld [vmem:[%s4 + $0x38] sm:$0xff]
      %v54 = vld [vmem:[%s4 + $0x40] sm:$0xff]
      %v55 = vld [vmem:[%s4 + $0x48] sm:$0xff]
      %v56 = vld [vmem:[%s4 + $0x50] sm:$0xff]
      %v57 = vld [vmem:[%s4 + $0x58] sm:$0xff]
      %v58 = vld [vmem:[%s4 + $0x60] sm:$0xff]
      %v59 = vld [vmem:[%s4 + $0x68] sm:$0xff]
      %v60 = vld [vmem:[%s4 + $0x70] sm:$0xff]
      %v61 = vld [vmem:[%s4 + $0x78] sm:$0xff]
      %63 = vset.pattern.permute.xlu0 1
      %64 = vperm.xlu0 %63, %v46
      %v65 = vpop.permute.xlu0 %64
      %68 = vset.pattern.permute.xlu0 1
      %69 = vperm.xlu0 %68, %v47
      %v70 = vpop.permute.xlu0 %69
      %73 = vset.pattern.permute.xlu0 1
      %74 = vperm.xlu0 %73, %v48
      %v75 = vpop.permute.xlu0 %74
      %78 = vset.pattern.permute.xlu0 1
      %79 = vperm.xlu0 %78, %v49
      %v80 = vpop.permute.xlu0 %79
      %83 = vset.pattern.permute.xlu0 1
      %84 = vperm.xlu0 %83, %v50
      %v85 = vpop.permute.xlu0 %84
      %88 = vset.pattern.permute.xlu0 1
      %89 = vperm.xlu0 %88, %v51
      %v90 = vpop.permute.xlu0 %89
      %93 = vset.pattern.permute.xlu0 1
      %94 = vperm.xlu0 %93, %v52
      %v95 = vpop.permute.xlu0 %94
      %98 = vset.pattern.permute.xlu0 1
      %99 = vperm.xlu0 %98, %v53
      %v100 = vpop.permute.xlu0 %99
      %103 = vset.pattern.permute.xlu0 1
      %104 = vperm.xlu0 %103, %v54
      %v105 = vpop.permute.xlu0 %104
      %108 = vset.pattern.permute.xlu0 1
      %109 = vperm.xlu0 %108, %v55
      %v110 = vpop.permute.xlu0 %109
      %113 = vset.pattern.permute.xlu0 1
      %114 = vperm.xlu0 %113, %v56
      %v115 = vpop.permute.xlu0 %114
      %118 = vset.pattern.permute.xlu0 1
      %119 = vperm.xlu0 %118, %v57
      %v120 = vpop.permute.xlu0 %119
      %123 = vset.pattern.permute.xlu0 1
      %124 = vperm.xlu0 %123, %v58
      %v125 = vpop.permute.xlu0 %124
      %128 = vset.pattern.permute.xlu0 1
      %129 = vperm.xlu0 %128, %v59
      %v130 = vpop.permute.xlu0 %129
      %133 = vset.pattern.permute.xlu0 1
      %134 = vperm.xlu0 %133, %v60
      %v135 = vpop.permute.xlu0 %134
      %138 = vset.pattern.permute.xlu0 1
      %139 = vperm.xlu0 %138, %v61
      %v140 = vpop.permute.xlu0 %139
      %v142 = vlaneseq
      %v143 = vshrl.u32 %v142, 7
      %v144 = vsub.s32 0, %v143
      %v145 = vrot.slane %v44, %v144
      %vm146 = vcmp.ge.f32.partialorder %v65, %v145
      %vm147 = vcmp.ge.f32.partialorder %v70, %v145
      %vm148 = vcmp.ge.f32.partialorder %v75, %v145
      %vm149 = vcmp.ge.f32.partialorder %v80, %v145
      %vm150 = vcmp.ge.f32.partialorder %v85, %v145
      %vm151 = vcmp.ge.f32.partialorder %v90, %v145
      %vm152 = vcmp.ge.f32.partialorder %v95, %v145
      %vm153 = vcmp.ge.f32.partialorder %v100, %v145
      %vm154 = vcmp.ge.f32.partialorder %v105, %v145
      %vm155 = vcmp.ge.f32.partialorder %v110, %v145
      %vm156 = vcmp.ge.f32.partialorder %v115, %v145
      %vm157 = vcmp.ge.f32.partialorder %v120, %v145
      %vm158 = vcmp.ge.f32.partialorder %v125, %v145
      %vm159 = vcmp.ge.f32.partialorder %v130, %v145
      %vm160 = vcmp.ge.f32.partialorder %v135, %v145
      %vm161 = vcmp.ge.f32.partialorder %v140, %v145
      %162 = vset.pattern.permute.xlu0 0
      %163 = vperm.xlu0 %162, %v46
      %v164 = vpop.permute.xlu0 %163
      %166 = vset.pattern.permute.xlu0 0
      %167 = vperm.xlu0 %166, %v47
      %v168 = vpop.permute.xlu0 %167
      %170 = vset.pattern.permute.xlu0 0
      %171 = vperm.xlu0 %170, %v48
      %v172 = vpop.permute.xlu0 %171
      %174 = vset.pattern.permute.xlu0 0
      %175 = vperm.xlu0 %174, %v49
      %v176 = vpop.permute.xlu0 %175
      %178 = vset.pattern.permute.xlu0 0
      %179 = vperm.xlu0 %178, %v50
      %v180 = vpop.permute.xlu0 %179
      %182 = vset.pattern.permute.xlu0 0
      %183 = vperm.xlu0 %182, %v51
      %v184 = vpop.permute.xlu0 %183
      %186 = vset.pattern.permute.xlu0 0
      %187 = vperm.xlu0 %186, %v52
      %v188 = vpop.permute.xlu0 %187
      %190 = vset.pattern.permute.xlu0 0
      %191 = vperm.xlu0 %190, %v53
      %v192 = vpop.permute.xlu0 %191
      %194 = vset.pattern.permute.xlu0 0
      %195 = vperm.xlu0 %194, %v54
      %v196 = vpop.permute.xlu0 %195
      %198 = vset.pattern.permute.xlu0 0
      %199 = vperm.xlu0 %198, %v55
      %v200 = vpop.permute.xlu0 %199
      %202 = vset.pattern.permute.xlu0 0
      %203 = vperm.xlu0 %202, %v56
      %v204 = vpop.permute.xlu0 %203
      %206 = vset.pattern.permute.xlu0 0
      %207 = vperm.xlu0 %206, %v57
      %v208 = vpop.permute.xlu0 %207
      %210 = vset.pattern.permute.xlu0 0
      %211 = vperm.xlu0 %210, %v58
      %v212 = vpop.permute.xlu0 %211
      %214 = vset.pattern.permute.xlu0 0
      %215 = vperm.xlu0 %214, %v59
      %v216 = vpop.permute.xlu0 %215
      %218 = vset.pattern.permute.xlu0 0
      %219 = vperm.xlu0 %218, %v60
      %v220 = vpop.permute.xlu0 %219
      %222 = vset.pattern.permute.xlu0 0
      %223 = vperm.xlu0 %222, %v61
      %v224 = vpop.permute.xlu0 %223
      %v226 = vsel %vm146, %v164, 0.0
      %v227 = vsel %vm147, %v168, 0.0
      %v228 = vsel %vm148, %v172, 0.0
      %v229 = vsel %vm149, %v176, 0.0
      %v230 = vsel %vm150, %v180, 0.0
      %v231 = vsel %vm151, %v184, 0.0
      %v232 = vsel %vm152, %v188, 0.0
      %v233 = vsel %vm153, %v192, 0.0
      %v234 = vsel %vm154, %v196, 0.0
      %v235 = vsel %vm155, %v200, 0.0
      %v236 = vsel %vm156, %v204, 0.0
      %v237 = vsel %vm157, %v208, 0.0
      %v238 = vsel %vm158, %v212, 0.0
      %v239 = vsel %vm159, %v216, 0.0
      %v240 = vsel %vm160, %v220, 0.0
      %v241 = vsel %vm161, %v224, 0.0
      %v242 = vadd.f32 %v226, %v227
      %v243 = vadd.f32 %v242, %v228
      %v244 = vadd.f32 %v243, %v229
      %v245 = vadd.f32 %v244, %v230
      %v246 = vadd.f32 %v245, %v231
      %v247 = vadd.f32 %v246, %v232
      %v248 = vadd.f32 %v247, %v233
      %v249 = vadd.f32 %v248, %v234
      %v250 = vadd.f32 %v249, %v235
      %v251 = vadd.f32 %v250, %v236
      %v252 = vadd.f32 %v251, %v237
      %v253 = vadd.f32 %v252, %v238
      %v254 = vadd.f32 %v253, %v239
      %v255 = vadd.f32 %v254, %v240
      %v256 = vadd.f32 %v255, %v241
      %v257 = vrot.slane %v256, 4
      %v258 = vadd.f32 %v256, %v257
      %v259 = vrot.slane %v258, 2
      %v260 = vadd.f32 %v258, %v259
      %v261 = vrot.slane %v260, 1
      %v262 = vadd.f32 %v260, %v261
      %v263 = vadd.f32 %v45, %v262
      %264 = vst [vmem:[#allocation2] sm:$0x1] %v263
    $region33: #{tpu_custom_call.1} parent=1 // pred_fallthru
      _
    // Predicated region
    $region34: #{tpu_custom_call.1} parent=1 // pred_check
      %p265 = pneg %p24
    $region35: #{tpu_custom_call.1} parent=1 // pred_check_branch
      %267 = sbr.rel (%p265) target = $region37
    $region36: #{tpu_custom_call.1} parent=1 // pred_region
      %s268 = sld [smem:[#allocation5]]
      %v269 = vld [vmem:[%s3] sm:$0x1]
      %v270 = vld [vmem:[%s3 + $0x2] sm:$0x1]
      %v271 = vld [vmem:[#allocation2] sm:$0x1]
      %v272 = vlog2.pop %v271
      %v273 = vmul.f32 %v272, 0.6931472
      %v274 = vstv %s268
      %v275 = vadd.f32 %v274, %v273
      %v276 = vmul.f32 %v269, 1.442695
      %v277 = vpow.pop %v276
      %vm278 = vcmp.gt.f32.partialorder %v270, 0.0
      %v279 = vsub.f32 %v277, %v275
      %v280 = vsel %vm278, %v279, 0.0
      %281 = vst [vmem:[#allocation6] sm:$0x1] %v280
    $region37: #{tpu_custom_call.1} parent=1 // pred_fallthru
      _
    // Predicated region
    $region38: #{tpu_custom_call.1} parent=1 // pred_check
      _
    $region39: #{tpu_custom_call.1} parent=1 // pred_check_branch
      %283 = sbr.rel (0) target = $region41
    $region40: #{tpu_custom_call.1} parent=1 // pred_region
      %s285 = ssub.s32 16, 16
      %286 = vsyncadd [#allocation7], %s285
      %s288 = sshll.u32 [#allocation6], 4
      %s289 = int_to_ptr.vmem [resolvable:$true] %s288
      %291 = dma.vmem_to_hbm [thread:$0]  %s289, 16, %s5, [#allocation7]
    $region41: #{tpu_custom_call.1} parent=1 // pred_fallthru
      _
    // Predicated region
    $region42: #{tpu_custom_call.1} parent=1 // pred_check
      _
    $region43: #{tpu_custom_call.1} parent=1 // pred_check_branch
      %293 = sbr.rel (0) target = $region45
    $region44: #{tpu_custom_call.1} parent=1 // pred_region
      %294 = dma.done [#allocation7], 16
    $region45: #{tpu_custom_call.1} parent=1 // pred_fallthru
      _
    %295 = vsyncpa [#allocation7], 1

</llo_original>
